<compile_context>
chip_gen: v7x
topology: tpu7x:2x2x1
jax: 0.10.0
libtpu: 0.0.40
codegen_flags: <defaults>
</compile_context>

<pallas_src>
import math
import functools

import jax
import jax.numpy as jnp
from jax.experimental import pallas as pl
from jax.experimental.pallas import tpu as pltpu

MARGIN = 0.5
SCALE = 64.0
BN_EPS = 1e-5
_NORM_EPS_SQ = 1e-24  # F.normalize eps (1e-12) squared, applied to sum of squares
_VMEM_LIMIT = 32 * 1024 * 1024


# ---------------------------------------------------------------------------
# Kernel 1: conv_last (im2col matmul) + folded BN/bias + ReLU + global avg pool
# ---------------------------------------------------------------------------
def _conv_bn_relu_pool_kernel(p_ref, w_ref, b_ref, out_ref, acc_ref, *,
                              batch, positions):
    k = pl.program_id(1)

    @pl.when(k == 0)
    def _init():
        acc_ref[...] = jnp.zeros_like(acc_ref)

    # [B*P, tk](bf16) @ [tk, tco](bf16) on the MXU, f32 accumulate.
    acc_ref[...] += jnp.dot(p_ref[...], w_ref[...],
                            preferred_element_type=jnp.float32)

    @pl.when(k == pl.num_programs(1) - 1)
    def _finalize():
        h = jnp.maximum(acc_ref[...] + b_ref[...], 0.0)     # folded BN/bias + ReLU
        tco = h.shape[-1]
        h = h.reshape(batch, positions, tco)
        # adaptive_avg_pool2d(1).squeeze(): mean over spatial positions P
        out_ref[...] = jnp.mean(h, axis=1).astype(out_ref.dtype)


def conv_bn_relu_pool(patches2d, wcol, bias_row, *, batch, positions,
                      tk=1024, tco=128):
    """patches2d: [B*P, K] f32, wcol: [K, Co] f32 (BN-folded), bias_row: [1, Co]."""
    M, K = patches2d.shape
    Co = wcol.shape[1]
    if Co % tco != 0:
        tco = Co
    tk = min(tk, ((K + 127) // 128) * 128)
    Kp = ((K + tk - 1) // tk) * tk
    if Kp != K:                                   # zero-pad reduction dim (exact)
        patches2d = jnp.pad(patches2d, ((0, 0), (0, Kp - K)))
        wcol = jnp.pad(wcol, ((0, Kp - K), (0, 0)))
    nk = Kp // tk
    nco = Co // tco

    kern = functools.partial(_conv_bn_relu_pool_kernel,
                             batch=batch, positions=positions)
    return pl.pallas_call(
        kern,
        out_shape=jax.ShapeDtypeStruct((batch, Co), jnp.float32),
        grid_spec=pltpu.PrefetchScalarGridSpec(
            num_scalar_prefetch=0,
            grid=(nco, nk),                       # reduction axis last
            in_specs=[
                pl.BlockSpec((M, tk), lambda j, k: (0, k)),
                pl.BlockSpec((tk, tco), lambda j, k: (k, j)),
                pl.BlockSpec((1, tco), lambda j, k: (0, j)),
            ],
            out_specs=pl.BlockSpec((batch, tco), lambda j, k: (0, j)),
            scratch_shapes=[pltpu.VMEM((M, tco), jnp.float32)],
        ),
        compiler_params=pltpu.CompilerParams(
            dimension_semantics=("parallel", "arbitrary"),
            vmem_limit_bytes=_VMEM_LIMIT),
    )(patches2d.astype(jnp.bfloat16), wcol.astype(jnp.bfloat16),
      bias_row.astype(jnp.float32))


# ---------------------------------------------------------------------------
# Kernel 2: embed Linear + F.normalize + Linear_norm head (arc-margin + scale)
# ---------------------------------------------------------------------------
def _embed_head_kernel(pooled_ref, ew_ref, hwt_ref, y_ref, out_ref, *,
                       sin_m, cos_m, scale, tc):
    j = pl.program_id(0)
    # embed Linear (no bias): [B, Co] @ [Co, E], f32 accumulate
    emb = jnp.dot(pooled_ref[...], ew_ref[...],
                  preferred_element_type=jnp.float32)
    # F.normalize(x, dim=1) via rsqrt (EUP)
    inv = jax.lax.rsqrt(
        jnp.maximum(jnp.sum(emb * emb, axis=1, keepdims=True), _NORM_EPS_SQ))
    emb_n = (emb * inv).astype(hwt_ref.dtype)
    # logits for this class tile: [B, E] @ [E, tc]  (weight pre-normalized + pre-T)
    logit = jnp.dot(emb_n, hwt_ref[...], preferred_element_type=jnp.float32)
    b = logit.shape[0]
    col = jax.lax.broadcasted_iota(jnp.int32, (b, tc), 1) + j * tc
    mask = col == y_ref[...]                      # y: [B, 1] int32
    mod = (sin_m * logit + cos_m) * logit - sin_m  # logit[i, y[i]] modification
    out_ref[...] = jnp.where(mask, mod, logit) * scale


def embed_head(pooled, embed_wT, head_w, y, *, margin=MARGIN, scale=SCALE, tc=128):
    B, Co = pooled.shape
    E = embed_wT.shape[1]
    C = head_w.shape[0]
    # Hoist the input-independent head weight normalization + transpose out of
    # the kernel; pad classes to a 128-lane multiple for unmasked stores.
    hw_n = head_w * jax.lax.rsqrt(
        jnp.maximum(jnp.sum(head_w * head_w, axis=1, keepdims=True), _NORM_EPS_SQ))
    hwt = hw_n.T.astype(jnp.bfloat16)             # [E, C]
    Cp = pl.cdiv(C, tc) * tc
    if Cp != C:
        hwt = jnp.pad(hwt, ((0, 0), (0, Cp - C)))
    nct = Cp // tc

    kern = functools.partial(_embed_head_kernel, sin_m=math.sin(margin),
                             cos_m=math.cos(margin), scale=float(scale), tc=tc)
    out = pl.pallas_call(
        kern,
        out_shape=jax.ShapeDtypeStruct((B, Cp), jnp.float32),
        grid_spec=pltpu.PrefetchScalarGridSpec(
            num_scalar_prefetch=0,
            grid=(nct,),
            in_specs=[
                pl.BlockSpec((B, Co), lambda j: (0, 0)),
                pl.BlockSpec((Co, E), lambda j: (0, 0)),
                pl.BlockSpec((E, tc), lambda j: (0, j)),
                pl.BlockSpec((B, 1), lambda j: (0, 0)),
            ],
            out_specs=pl.BlockSpec((B, tc), lambda j: (0, j)),
        ),
        compiler_params=pltpu.CompilerParams(
            dimension_semantics=("parallel",),
            vmem_limit_bytes=_VMEM_LIMIT),
    )(pooled.astype(jnp.bfloat16), embed_wT.astype(jnp.bfloat16),
      hwt, y.astype(jnp.int32)[:, None])
    return out[:, :C]


# ---------------------------------------------------------------------------
# Glue
# ---------------------------------------------------------------------------
def _im2col(x, kh, kw):
    # x: [B, C, H, W] -> [B, OH*OW, C*kh*kw] (flattening order matches torch Conv2d)
    B, C, H, W = x.shape
    oh, ow = H - kh + 1, W - kw + 1
    cols = []
    for i in range(kh):
        for j in range(kw):
            cols.append(x[:, :, i:i + oh, j:j + ow])         # [B, C, oh, ow]
    p = jnp.stack(cols, axis=0)                               # [kh*kw, B, C, oh, ow]
    p = p.transpose(1, 3, 4, 2, 0)                            # [B, oh, ow, C, kh*kw]
    return p.reshape(B, oh * ow, C * kh * kw)


def _fold_conv_bn(params):
    """Fold Conv2d bias + eval-mode BatchNorm2d into one matmul weight / bias."""
    conv_w = params["conv_w"]                                 # [Co, Ci, KH, KW]
    Co = conv_w.shape[0]
    bn_scale = params["bn_gamma"] * jax.lax.rsqrt(params["bn_var"] + BN_EPS)
    bn_shift = params["bn_beta"] - params["bn_mean"] * bn_scale
    wcol = conv_w.reshape(Co, -1).T * bn_scale[None, :]       # [Ci*KH*KW, Co]
    bias = (params["conv_b"] * bn_scale + bn_shift)[None, :]  # [1, Co]
    return wcol, bias


def _forward_parts(params, x, y):
    B = x.shape[0]
    patches = _im2col(x, 7, 7)                                # [B, P, K]
    P = patches.shape[1]
    patches2d = patches.reshape(B * P, -1)
    wcol, bias = _fold_conv_bn(params)
    pooled = conv_bn_relu_pool(patches2d, wcol, bias, batch=B, positions=P)
    logits = embed_head(pooled, params["embed_w"].T, params["head_w"], y)
    return pooled, logits


def shopee_forward(params, x, y):
    """x: NCHW backbone feature map [B, C, H, W]; y: int labels [B]."""
    return _forward_parts(params, x, y)[1]


# ---------------------------------------------------------------------------
# Parameters (deterministic, mirroring the module shapes — scaled down)
# ---------------------------------------------------------------------------
def init_params(key, n_out, n_embed, num_classes, k=7):
    k_conv_w, k_conv_b, k_embed, k_head = jax.random.split(key, 4)
    fan_in = n_out * k * k
    return dict(
        conv_w=jax.random.normal(k_conv_w, (n_out, n_out, k, k), jnp.float32)
        * math.sqrt(2.0 / fan_in),
        conv_b=jax.random.normal(k_conv_b, (n_out,), jnp.float32) * 0.01,
        bn_gamma=jnp.ones((n_out,), jnp.float32),
        bn_beta=jnp.zeros((n_out,), jnp.float32),
        bn_mean=jnp.zeros((n_out,), jnp.float32),
        bn_var=jnp.ones((n_out,), jnp.float32),
        embed_w=jax.random.normal(k_embed, (n_embed, n_out), jnp.float32)
        * math.sqrt(1.0 / n_out),
        head_w=jax.random.normal(k_head, (num_classes, n_embed), jnp.float32)
        * math.sqrt(2.0 / n_embed),
    )


# ---------------------------------------------------------------------------
# Pure-JAX references (same bf16 matmul / f32 accumulate precision plan)
# ---------------------------------------------------------------------------
def reference_pooled(params, x):
    B = x.shape[0]
    patches = _im2col(x, 7, 7)
    P = patches.shape[1]
    wcol, bias = _fold_conv_bn(params)
    h = jnp.dot(patches.reshape(B * P, -1).astype(jnp.bfloat16),
                wcol.astype(jnp.bfloat16), preferred_element_type=jnp.float32)
    h = jnp.maximum(h + bias, 0.0)
    return jnp.mean(h.reshape(B, P, -1), axis=1)


def reference_head(params, pooled, y):
    B = pooled.shape[0]
    emb = jnp.dot(pooled.astype(jnp.bfloat16),
                  params["embed_w"].T.astype(jnp.bfloat16),
                  preferred_element_type=jnp.float32)
    emb_n = emb * jax.lax.rsqrt(
        jnp.maximum(jnp.sum(emb * emb, axis=1, keepdims=True), _NORM_EPS_SQ))
    hw = params["head_w"]
    hw_n = hw * jax.lax.rsqrt(
        jnp.maximum(jnp.sum(hw * hw, axis=1, keepdims=True), _NORM_EPS_SQ))
    logit = jnp.dot(emb_n.astype(jnp.bfloat16), hw_n.T.astype(jnp.bfloat16),
                    preferred_element_type=jnp.float32)
    rows = jnp.arange(B)
    out = logit[rows, y]
    sin_m, cos_m = math.sin(MARGIN), math.cos(MARGIN)
    logit = logit.at[rows, y].set((sin_m * out + cos_m) * out - sin_m)
    return logit * SCALE


if __name__ == "__main__":
    # Small, lane-aligned shapes (scaled-down n_out=1280 -> 128, n_embed=512 -> 128).
    # 8x8 feature map with the 7x7 conv gives P=4 spatial positions (exercises the
    # fused pooling); num_classes=200 exercises the 128-lane class padding path.
    B, C, H, W = 2, 128, 8, 8
    N_EMBED, NUM_CLASSES = 128, 200

    key = jax.random.PRNGKey(0)
    k_x, k_y, k_params = jax.random.split(key, 3)
    x = jax.random.normal(k_x, (B, C, H, W), jnp.float32)     # backbone features
    y = jax.random.randint(k_y, (B,), 0, NUM_CLASSES, dtype=jnp.int32)
    params = init_params(k_params, C, N_EMBED, NUM_CLASSES)

    pooled, logits = _forward_parts(params, x, y)
    pooled, logits = jax.block_until_ready((pooled, logits))
    assert logits.shape == (B, NUM_CLASSES)

    ref_pool = jax.block_until_ready(reference_pooled(params, x))
    assert jnp.allclose(pooled, ref_pool, rtol=1e-3, atol=1e-3), "pooled mismatch"

    ref_logits = jax.block_until_ready(reference_head(params, pooled, y))
    assert jnp.allclose(logits, ref_logits, rtol=1e-2, atol=5e-2), "logits mismatch"

    print("KERNEL_OK")
</pallas_src>

<mosaic_0001>
module attributes {stable_mosaic.version = 11 : i64} {
  func.func @_conv_bn_relu_pool_kernel(%arg0: i32, %arg1: i32, %arg2: memref<8x1024xbf16, #tpu.memory_space<vmem>>, %arg3: memref<1024x128xbf16, #tpu.memory_space<vmem>>, %arg4: memref<1x128xf32, #tpu.memory_space<vmem>>, %arg5: memref<2x128xf32, #tpu.memory_space<vmem>>, %arg6: memref<8x128xf32, #tpu.memory_space<vmem>>) attributes {dimension_semantics = [#tpu.dimension_semantics<parallel>, #tpu.dimension_semantics<arbitrary>], iteration_bounds = array<i64: 1, 7>, scalar_prefetch = 0 : i64, scratch_operands = 1 : i64, tpu.core_type = #tpu.core_type<tc>, window_params = [{transform_indices = @transform_0, window_bounds = array<i64: 8, 1024>}, {transform_indices = @transform_1, window_bounds = array<i64: 1024, 128>}, {transform_indices = @transform_2, window_bounds = array<i64: 1, 128>}, {transform_indices = @transform_3, window_bounds = array<i64: 2, 128>}]} {
    %c0_i32 = arith.constant 0 : i32
    %0 = arith.cmpi eq, %arg1, %c0_i32 : i32
    %1 = arith.extui %0 : i1 to i32
    %c0_i32_0 = arith.constant 0 : i32
    %2 = arith.cmpi ne, %1, %c0_i32_0 : i32
    scf.if %2 {
      %cst_9 = arith.constant 0.000000e+00 : f32
      %12 = vector.broadcast %cst_9 : f32 to vector<8x128xf32>
      %c0_10 = arith.constant 0 : index
      %c0_11 = arith.constant 0 : index
      %13 = vector.load %arg6[%c0_10, %c0_11] : memref<8x128xf32, #tpu.memory_space<vmem>>, vector<8x128xf32>
      tpu.vector_store %arg6[%c0_10, %c0_11], %12 {strides = array<i32>} : memref<8x128xf32, #tpu.memory_space<vmem>>, vector<8x128xf32>,
    } else {
    }
    %c0 = arith.constant 0 : index
    %c0_1 = arith.constant 0 : index
    %3 = vector.load %arg6[%c0, %c0_1] : memref<8x128xf32, #tpu.memory_space<vmem>>, vector<8x128xf32>
    %c0_2 = arith.constant 0 : index
    %c0_3 = arith.constant 0 : index
    %4 = vector.load %arg2[%c0_2, %c0_3] : memref<8x1024xbf16, #tpu.memory_space<vmem>>, vector<8x1024xbf16>
    %c0_4 = arith.constant 0 : index
    %c0_5 = arith.constant 0 : index
    %5 = vector.load %arg3[%c0_4, %c0_5] : memref<1024x128xbf16, #tpu.memory_space<vmem>>, vector<1024x128xbf16>
    %cst = arith.constant dense<0.000000e+00> : vector<8x128xf32>
    %6 = tpu.matmul %4, %5, %cst {dimension_numbers = #tpu.dot_dimension_numbers<[1], [0], [0], [1], [0, 0, 1, 1], [], []>} : vector<8x1024xbf16>, vector<1024x128xbf16>, vector<8x128xf32> -> vector<8x128xf32>
    %7 = arith.addf %3, %6 : vector<8x128xf32>
    %c0_6 = arith.constant 0 : index
    %c0_7 = arith.constant 0 : index
    %8 = vector.load %arg6[%c0_6, %c0_7] : memref<8x128xf32, #tpu.memory_space<vmem>>, vector<8x128xf32>
    tpu.vector_store %arg6[%c0_6, %c0_7], %7 {strides = array<i32>} : memref<8x128xf32, #tpu.memory_space<vmem>>, vector<8x128xf32>,
    %c6_i32 = arith.constant 6 : i32
    %9 = arith.cmpi eq, %arg1, %c6_i32 : i32
    %10 = arith.extui %9 : i1 to i32
    %c0_i32_8 = arith.constant 0 : i32
    %11 = arith.cmpi ne, %10, %c0_i32_8 : i32
    scf.if %11 {
      %c0_9 = arith.constant 0 : index
      %c0_10 = arith.constant 0 : index
      %12 = vector.load %arg6[%c0_9, %c0_10] : memref<8x128xf32, #tpu.memory_space<vmem>>, vector<8x128xf32>
      %c0_11 = arith.constant 0 : index
      %c0_12 = arith.constant 0 : index
      %13 = vector.load %arg4[%c0_11, %c0_12] : memref<1x128xf32, #tpu.memory_space<vmem>>, vector<1x128xf32>
      %14 = vector.broadcast %13 : vector<1x128xf32> to vector<8x128xf32>
      %15 = arith.addf %12, %14 : vector<8x128xf32>
      %cst_13 = arith.constant 0.000000e+00 : f32
      %16 = vector.broadcast %cst_13 : f32 to vector<8x128xf32>
      %17 = arith.maximumf %15, %16 : vector<8x128xf32>
      %18 = vector.shape_cast %17 : vector<8x128xf32> to vector<2x4x128xf32>
      %cst_14 = arith.constant dense<0.000000e+00> : vector<2x128xf32>
      %19 = vector.multi_reduction <add>, %18, %cst_14 [1] : vector<2x4x128xf32> to vector<2x128xf32>
      %cst_15 = arith.constant 4.000000e+00 : f32
      %20 = vector.broadcast %cst_15 : f32 to vector<2x128xf32>
      %21 = arith.divf %19, %20 : vector<2x128xf32>
      %c0_16 = arith.constant 0 : index
      %c0_17 = arith.constant 0 : index
      %22 = vector.load %arg5[%c0_16, %c0_17] : memref<2x128xf32, #tpu.memory_space<vmem>>, vector<2x128xf32>
      tpu.vector_store %arg5[%c0_16, %c0_17], %21 {strides = array<i32>} : memref<2x128xf32, #tpu.memory_space<vmem>>, vector<2x128xf32>,
    } else {
    }
    return
  }
  func.func @transform_0(%arg0: i32, %arg1: i32) -> (i32, i32) {
    %c0_i32 = arith.constant 0 : i32
    %c0_i32_0 = arith.constant 0 : i32
    return %c0_i32, %arg1 : i32, i32
  }
  func.func @transform_1(%arg0: i32, %arg1: i32) -> (i32, i32) {
    %c0_i32 = arith.constant 0 : i32
    return %arg1, %arg0 : i32, i32
  }
  func.func @transform_2(%arg0: i32, %arg1: i32) -> (i32, i32) {
    %c0_i32 = arith.constant 0 : i32
    %c0_i32_0 = arith.constant 0 : i32
    return %c0_i32, %arg0 : i32, i32
  }
  func.func @transform_3(%arg0: i32, %arg1: i32) -> (i32, i32) {
    %c0_i32 = arith.constant 0 : i32
    %c0_i32_0 = arith.constant 0 : i32
    return %c0_i32, %arg0 : i32, i32
  }
}

</mosaic_0001>

<llo_original>
// kernel: tpu_custom_call.1
$region0: #{tpu_custom_call.1}
  #allocation0 [shape = 'u32[]', space=smem, size = 0x4, offset = 0x4, fixed_abs, tag = 'smem constant byte address 0x4 - core index']
  #allocation1 [shape = 'u32[144,128]{1,0:T(1,128)}', space=vmem, size = 0x12000, scoped, tag = 'internal scratch']
  #allocation2 [shape = 'f32[8,128]{1,0:T(8,128)}', space=vmem, size = 0x1000, scoped, tag = 'scratch operand']
  %s0 = inlined_call_operand.hbm [shape: bf16[8,7168], index: 0, kind: input, shape index: {}]
  %s1 = inlined_call_operand.hbm [shape: bf16[7168,128], index: 1, kind: input, shape index: {}]
  %s2 = inlined_call_operand.hbm [shape: f32[1,128], index: 2, kind: input, shape index: {}]
  %s3 = inlined_call_operand.hbm [shape: f32[2,128], index: 3, kind: output, shape index: {}]
  %s4 = sld [smem:[#allocation0]]
  $region65: #{tpu_custom_call.1} parent=0
    _
  %s6 = ssub.s32 1, %s4
  %s7 = scalar_select 0, %s6, %s4
  $region1: #{tpu_custom_call.1} parent=0
    #allocation3 [shape = 'u8[32768]{0}', space=vmem, size = 0x8000, scoped, tag = 'input window, operand 0']
    #allocation4 [shape = 's32[2]{0}', space=sflag, size = 0x8, scoped, tag = 'scoped memory for tpu_custom_call.1']
    #allocation5 [shape = 's32[2]{0}', space=sflag, size = 0x8, scoped, tag = 'scoped memory for tpu_custom_call.1']
    #allocation6 [shape = 'u8[524288]{0}', space=vmem, size = 0x80000, scoped, tag = 'input window, operand 1']
    #allocation7 [shape = 's32[2]{0}', space=sflag, size = 0x8, scoped, tag = 'scoped memory for tpu_custom_call.1']
    #allocation8 [shape = 'u8[512]{0}', space=vmem, size = 0x400, scoped, tag = 'input window, operand 2, single buffered']
    #allocation9 [shape = 'u8[1024]{0}', space=vmem, size = 0x400, scoped, tag = 'output window, operand 0, single buffered']
    %8 = vsyncpa [#allocation4], 0
    %s9 = scalar_lea.sflag [#allocation4], 1
    %10 = vsyncpa %s9, 0
    %11 = vsyncpa [#allocation7], 0
    %s12 = scalar_lea.sflag [#allocation7], 1
    %13 = vsyncpa %s12, 0
    %14 = vsyncpa [#allocation5], 0
    loop: start=0, step=1, limit=9
    $region2: #{tpu_custom_call.1} parent=1 // loop_pre_header
      _
    $region3: #{tpu_custom_call.1} parent=1 // loop_header
      %s16 = sphi 0, %s20
      %p17 = scmp.ge.s32.totalorder %s16, 9
      %s23 = sphi 0, %s35
      %s24 = sphi 0, %s31
      %s25 = sphi 0, %s23
      %s26 = sphi 0, %s24
      %s27 = sphi 0, %s25
      %s28 = sphi 0, %s26
      %s38 = sphi 0, %s40
      %s41 = sphi 0, %s38
      %s42 = sphi 0, %s41
      %s58 = sphi 0, %s42
      %s66 = sphi 0, %s68
      %s69 = sphi 0, %s66
      %s70 = sphi 0, %s69
      %s86 = sphi 0, %s70
      %s92 = sphi 0, %s94
      %s95 = sphi 0, %s92
      %s96 = sphi 0, %s95
      %s112 = sphi 0, %s96
      %s118 = sphi 0, %s120
      %s121 = sphi 0, %s118
      %s122 = sphi 0, %s121
      %s138 = sphi 0, %s122
    $region4: #{tpu_custom_call.1} parent=1 // loop_header_branch
      %19 = sbr.rel (%p17) target = $region8
    $region5: #{tpu_custom_call.1} parent=1 // loop_body
      %s21 = ssub.s32 %s16, 1
      %s22 = ssub.s32 %s16, 2
      %s29 = sadd.s32 1, %s24
      %p30 = scmp.ge.s32.totalorder %s29, 7
      %s31 = scalar_select %p30, 0, %s29
      %s32 = sadd.s32 1, %s23
      %s33 = scalar_select %p30, %s32, %s23
      %p34 = scmp.ge.s32.totalorder %s33, 1
      %s35 = scalar_select %p34, 0, %s33
      %s36 = ssub.s32 %s24, %s31
      %p37 = scmp.eq.s32.totalorder %s36, 0
      %s39 = sadd.s32 %s38, 1
      %s40 = scalar_select %p37, %s38, %s39
      %p43 = pneg %p37
      %p44 = scmp.eq.s32.totalorder %s16, 6
      %p45 = por %p43, %p44
      %p46 = scmp.ne.s32.totalorder %s38, %s41
      %p47 = scmp.eq.s32.totalorder %s16, 0
      %p48 = por %p46, %p47
      %p49 = scmp.ne.s32.totalorder %s38, %s41
      %p50 = scmp.eq.s32.totalorder %s21, 6
      %p51 = por %p49, %p50
      %p52 = scmp.ne.s32.totalorder %s41, %s42
      %p53 = scmp.eq.s32.totalorder %s21, 0
      %p54 = por %p52, %p53
      %p55 = scmp.ne.s32.totalorder %s41, %s42
      %p56 = scmp.eq.s32.totalorder %s22, 6
      %p57 = por %p55, %p56
      %p59 = scmp.ne.s32.totalorder %s42, %s58
      %p60 = scmp.eq.s32.totalorder %s22, 0
      %p61 = por %p59, %p60
      %s62 = ssub.s32 %s24, %s31
      %s63 = ssub.s32 %s23, %s35
      %s64 = sor.u32 %s62, %s63
      %p65 = scmp.eq.s32.totalorder %s64, 0
      %s67 = sadd.s32 %s66, 1
      %s68 = scalar_select %p65, %s66, %s67
      %p71 = pneg %p65
      %p72 = scmp.eq.s32.totalorder %s16, 6
      %p73 = por %p71, %p72
      %p74 = scmp.ne.s32.totalorder %s66, %s69
      %p75 = scmp.eq.s32.totalorder %s16, 0
      %p76 = por %p74, %p75
      %p77 = scmp.ne.s32.totalorder %s66, %s69
      %p78 = scmp.eq.s32.totalorder %s21, 6
      %p79 = por %p77, %p78
      %p80 = scmp.ne.s32.totalorder %s69, %s70
      %p81 = scmp.eq.s32.totalorder %s21, 0
      %p82 = por %p80, %p81
      %p83 = scmp.ne.s32.totalorder %s69, %s70
      %p84 = scmp.eq.s32.totalorder %s22, 6
      %p85 = por %p83, %p84
      %p87 = scmp.ne.s32.totalorder %s70, %s86
      %p88 = scmp.eq.s32.totalorder %s22, 0
      %p89 = por %p87, %p88
      %s90 = ssub.s32 %s23, %s35
      %p91 = scmp.eq.s32.totalorder %s90, 0
      %s93 = sadd.s32 %s92, 1
      %s94 = scalar_select %p91, %s92, %s93
      %p97 = pneg %p91
      %p98 = scmp.eq.s32.totalorder %s16, 6
      %p99 = por %p97, %p98
      %p100 = scmp.ne.s32.totalorder %s92, %s95
      %p101 = scmp.eq.s32.totalorder %s16, 0
      %p102 = por %p100, %p101
      %p103 = scmp.ne.s32.totalorder %s92, %s95
      %p104 = scmp.eq.s32.totalorder %s21, 6
      %p105 = por %p103, %p104
      %p106 = scmp.ne.s32.totalorder %s95, %s96
      %p107 = scmp.eq.s32.totalorder %s21, 0
      %p108 = por %p106, %p107
      %p109 = scmp.ne.s32.totalorder %s95, %s96
      %p110 = scmp.eq.s32.totalorder %s22, 6
      %p111 = por %p109, %p110
      %p113 = scmp.ne.s32.totalorder %s96, %s112
      %p114 = scmp.eq.s32.totalorder %s22, 0
      %p115 = por %p113, %p114
      %s116 = ssub.s32 %s23, %s35
      %p117 = scmp.eq.s32.totalorder %s116, 0
      %s119 = sadd.s32 %s118, 1
      %s120 = scalar_select %p117, %s118, %s119
      %p123 = pneg %p117
      %p124 = scmp.eq.s32.totalorder %s16, 6
      %p125 = por %p123, %p124
      %p126 = scmp.ne.s32.totalorder %s118, %s121
      %p127 = scmp.eq.s32.totalorder %s16, 0
      %p128 = por %p126, %p127
      %p129 = scmp.ne.s32.totalorder %s118, %s121
      %p130 = scmp.eq.s32.totalorder %s21, 6
      %p131 = por %p129, %p130
      %p132 = scmp.ne.s32.totalorder %s121, %s122
      %p133 = scmp.eq.s32.totalorder %s21, 0
      %p134 = por %p132, %p133
      %p135 = scmp.ne.s32.totalorder %s121, %s122
      %p136 = scmp.eq.s32.totalorder %s22, 6
      %p137 = por %p135, %p136
      %p139 = scmp.ne.s32.totalorder %s122, %s138
      %p140 = scmp.eq.s32.totalorder %s22, 0
      %p141 = por %p139, %p140
      %p142 = scmp.le.s32.totalorder 1, %s16
      %p143 = scmp.lt.s32.totalorder %s16, 8
      %p144 = pnand %p142, %p143
      %p145 = pneg %p144
      // Predicated region
      $region9: #{tpu_custom_call.1} parent=5 // pred_check
        _
      $region10: #{tpu_custom_call.1} parent=5 // pred_check_branch
        %147 = sbr.rel (%p144) target = $region12
      $region11: #{tpu_custom_call.1} parent=5 // pred_region
        %s148 = ssub.s32 %s16, 1
        // Predicated region
        $region13: #{tpu_custom_call.1} parent=11 // pred_check
          %p149 = pneg %p108
        $region14: #{tpu_custom_call.1} parent=11 // pred_check_branch
          %151 = sbr.rel (%p149) target = $region16
        $region15: #{tpu_custom_call.1} parent=11 // pred_region
          %s153 = ssub.s32 16, 16
          %154 = vsyncadd [#allocation7], %s153
          %s155 = smul.addr %s25, 16
          %s156 = scalar_lea.hbm %s2, %s155
          %s158 = sshll.u32 [#allocation8], 4
          %s159 = int_to_ptr.vmem [resolvable:$true] %s158
          %161 = dma.hbm_to_vmem [thread:$0]  %s156, 16, %s159, [#allocation7]
        $region16: #{tpu_custom_call.1} parent=11 // pred_fallthru
          _
      $region12: #{tpu_custom_call.1} parent=5 // pred_fallthru
        _
      %p162 = scmp.lt.s32.totalorder %s16, 7
      // Predicated region
      $region17: #{tpu_custom_call.1} parent=5 // pred_check
        %p163 = pneg %p162
      $region18: #{tpu_custom_call.1} parent=5 // pred_check_branch
        %165 = sbr.rel (%p163) target = $region20
      $region19: #{tpu_custom_call.1} parent=5 // pred_region
        // Predicated region
        $region21: #{tpu_custom_call.1} parent=19 // pred_check
          %p166 = pneg %p48
        $region22: #{tpu_custom_call.1} parent=19 // pred_check_branch
          %168 = sbr.rel (%p166) target = $region24
        $region23: #{tpu_custom_call.1} parent=19 // pred_region
          %s169 = sand.u32 %s38, 1
          %s170 = scalar_lea.sflag [#allocation4], %s169
          %s171 = sand.u32 %s38, 1
          %s172 = smul.addr %s171, 32
          %s173 = scalar_lea.vmem [#allocation3], %s172
          %s174 = smul.u32 8, %s24
          %s176 = ssub.s32 512, 512
          %177 = vsyncadd %s170, %s176
          %s178 = smul.addr %s174, 64
          %s179 = scalar_lea.hbm %s0, %s178
          %s181 = sshll.u32 %s173, 4
          %s182 = int_to_ptr.vmem [resolvable:$true] %s181
          %184 = dma.hbm_to_vmem [thread:$0]  %s179, 512, %s182, %s170
        $region24: #{tpu_custom_call.1} parent=19 // pred_fallthru
          _
        // Predicated region
        $region25: #{tpu_custom_call.1} parent=19 // pred_check
          %p185 = pneg %p76
        $region26: #{tpu_custom_call.1} parent=19 // pred_check_branch
          %187 = sbr.rel (%p185) target = $region28
        $region27: #{tpu_custom_call.1} parent=19 // pred_region
          %s188 = sand.u32 %s16, 1
          %s189 = scalar_lea.sflag [#allocation7], %s188
          %s190 = sand.u32 %s66, 1
          %s191 = smul.addr %s190, 512
          %s192 = scalar_lea.vmem [#allocation6], %s191
          %s193 = smul.u32 128, %s24
          %s195 = ssub.s32 8192, 8192
          %196 = vsyncadd %s189, %s195
          %s197 = sadd.s32 %s23, %s193
          %s198 = smul.addr %s197, 64
          %s199 = scalar_lea.hbm %s1, %s198
          %s200 = sshll.u32 %s192, 4
          %s201 = int_to_ptr.vmem [resolvable:$true] %s200
          %206 = dma.hbm_to_vmem [thread:$0]  %s199, 8192, %s201, %s189, 64, 64, 4
        $region28: #{tpu_custom_call.1} parent=19 // pred_fallthru
          _
      $region20: #{tpu_custom_call.1} parent=5 // pred_fallthru
        _
      %p207 = scmp.le.s32.totalorder 1, %s16
      %p208 = scmp.lt.s32.totalorder %s16, 8
      %p209 = pnand %p207, %p208
      %p210 = pneg %p209
      // Predicated region
      $region29: #{tpu_custom_call.1} parent=5 // pred_check
        _
      $region30: #{tpu_custom_call.1} parent=5 // pred_check_branch
        %212 = sbr.rel (%p209) target = $region32
      $region31: #{tpu_custom_call.1} parent=5 // pred_region
        %s213 = ssub.s32 %s16, 1
        %s214 = sand.u32 %s41, 1
        %s215 = scalar_lea.sflag [#allocation4], %s214
        %s216 = sand.u32 %s41, 1
        %s217 = smul.addr %s216, 32
        %s218 = scalar_lea.vmem [#allocation3], %s217
        // Predicated region
        $region33: #{tpu_custom_call.1} parent=31 // pred_check
          %p219 = pneg %p54
        $region34: #{tpu_custom_call.1} parent=31 // pred_check_branch
          %221 = sbr.rel (%p219) target = $region36
        $region35: #{tpu_custom_call.1} parent=31 // pred_region
          %222 = dma.done %s215, 512
        $region36: #{tpu_custom_call.1} parent=31 // pred_fallthru
          _
        %s223 = sand.u32 %s21, 1
        %s224 = scalar_lea.sflag [#allocation7], %s223
        %s225 = sand.u32 %s69, 1
        %s226 = smul.addr %s225, 512
        %s227 = scalar_lea.vmem [#allocation6], %s226
        // Predicated region
        $region37: #{tpu_custom_call.1} parent=31 // pred_check
          %p228 = pneg %p82
        $region38: #{tpu_custom_call.1} parent=31 // pred_check_branch
          %230 = sbr.rel (%p228) target = $region40
        $region39: #{tpu_custom_call.1} parent=31 // pred_region
          %231 = dma.done %s224, 8192
        $region40: #{tpu_custom_call.1} parent=31 // pred_fallthru
          _
        // Predicated region
        $region41: #{tpu_custom_call.1} parent=31 // pred_check
          %p232 = pneg %p108
        $region42: #{tpu_custom_call.1} parent=31 // pred_check_branch
          %234 = sbr.rel (%p232) target = $region44
        $region43: #{tpu_custom_call.1} parent=31 // pred_region
          %235 = dma.done [#allocation7], 16
        $region44: #{tpu_custom_call.1} parent=31 // pred_fallthru
          _
        %s236 = sand.u32 %s41, 1
        %s237 = scalar_lea.sflag [#allocation4], %s236
        %s238 = sand.u32 %s41, 1
        %s239 = smul.addr %s238, 32
        %s240 = scalar_lea.vmem [#allocation3], %s239
        %p241 = pneg %p54
        %p242 = pneg %p51
        %s243 = sand.u32 %s21, 1
        %s244 = scalar_lea.sflag [#allocation7], %s243
        %s245 = sand.u32 %s69, 1
        %s246 = smul.addr %s245, 512
        %s247 = scalar_lea.vmem [#allocation6], %s246
        %p248 = pneg %p82
        %p249 = pneg %p79
        %p250 = pneg %p108
        %p251 = pneg %p105
        %p252 = pneg %p134
        %p253 = pneg %p131
        %s254 = smul.u32 8, %s26
        %s255 = smul.u32 128, %s26
        %p257 = scmp.eq.s32.totalorder %s26, 0
        // Predicated region
        $region45: #{tpu_custom_call.1} parent=31 // pred_check
          %p258 = pneg %p257
        $region46: #{tpu_custom_call.1} parent=31 // pred_check_branch
          %260 = sbr.rel (%p258) target = $region48
        $region47: #{tpu_custom_call.1} parent=31 // pred_region
          %261 = vst [vmem:[#allocation2] sm:$0xff] 0.0
        $region48: #{tpu_custom_call.1} parent=31 // pred_fallthru
          _
        %v262 = vld [vmem:[#allocation2] sm:$0xff]
        %v263 = vld [vmem:[%s218] sm:$0xff]
        %v264 = vld [vmem:[%s218 + $0x8] sm:$0xff]
        %v265 = vld [vmem:[%s218 + $0x10] sm:$0xff]
        %v266 = vld [vmem:[%s218 + $0x18] sm:$0xff]
        %v267 = vld [vmem:[%s227] sm:$0xf]
        %v268 = vld [vmem:[%s227 + $0x4] sm:$0xf]
        %v269 = vld [vmem:[%s227 + $0x8] sm:$0xf]
        %v270 = vld [vmem:[%s227 + $0xc] sm:$0xf]
        %v271 = vld [vmem:[%s227 + $0x10] sm:$0xf]
        %v272 = vld [vmem:[%s227 + $0x14] sm:$0xf]
        %v273 = vld [vmem:[%s227 + $0x18] sm:$0xf]
        %v274 = vld [vmem:[%s227 + $0x1c] sm:$0xf]
        %v275 = vld [vmem:[%s227 + $0x20] sm:$0xf]
        %v276 = vld [vmem:[%s227 + $0x24] sm:$0xf]
        %v277 = vld [vmem:[%s227 + $0x28] sm:$0xf]
        %v278 = vld [vmem:[%s227 + $0x2c] sm:$0xf]
        %v279 = vld [vmem:[%s227 + $0x30] sm:$0xf]
        %v280 = vld [vmem:[%s227 + $0x34] sm:$0xf]
        %v281 = vld [vmem:[%s227 + $0x38] sm:$0xf]
        %v282 = vld [vmem:[%s227 + $0x3c] sm:$0xf]
        %v283 = vld [vmem:[%s227 + $0x40] sm:$0xf]
        %v284 = vld [vmem:[%s227 + $0x44] sm:$0xf]
        %v285 = vld [vmem:[%s227 + $0x48] sm:$0xf]
        %v286 = vld [vmem:[%s227 + $0x4c] sm:$0xf]
        %v287 = vld [vmem:[%s227 + $0x50] sm:$0xf]
        %v288 = vld [vmem:[%s227 + $0x54] sm:$0xf]
        %v289 = vld [vmem:[%s227 + $0x58] sm:$0xf]
        %v290 = vld [vmem:[%s227 + $0x5c] sm:$0xf]
        %v291 = vld [vmem:[%s227 + $0x60] sm:$0xf]
        %v292 = vld [vmem:[%s227 + $0x64] sm:$0xf]
        %v293 = vld [vmem:[%s227 + $0x68] sm:$0xf]
        %v294 = vld [vmem:[%s227 + $0x6c] sm:$0xf]
        %v295 = vld [vmem:[%s227 + $0x70] sm:$0xf]
        %v296 = vld [vmem:[%s227 + $0x74] sm:$0xf]
        %v297 = vld [vmem:[%s227 + $0x78] sm:$0xf]
        %v298 = vld [vmem:[%s227 + $0x7c] sm:$0xf]
        %v299 = vld [vmem:[%s227 + $0x80] sm:$0xf]
        %v300 = vld [vmem:[%s227 + $0x84] sm:$0xf]
        %v301 = vld [vmem:[%s227 + $0x88] sm:$0xf]
        %v302 = vld [vmem:[%s227 + $0x8c] sm:$0xf]
        %v303 = vld [vmem:[%s227 + $0x90] sm:$0xf]
        %v304 = vld [vmem:[%s227 + $0x94] sm:$0xf]
        %v305 = vld [vmem:[%s227 + $0x98] sm:$0xf]
        %v306 = vld [vmem:[%s227 + $0x9c] sm:$0xf]
        %v307 = vld [vmem:[%s227 + $0xa0] sm:$0xf]
        %v308 = vld [vmem:[%s227 + $0xa4] sm:$0xf]
        %v309 = vld [vmem:[%s227 + $0xa8] sm:$0xf]
        %v310 = vld [vmem:[%s227 + $0xac] sm:$0xf]
        %v311 = vld [vmem:[%s227 + $0xb0] sm:$0xf]
        %v312 = vld [vmem:[%s227 + $0xb4] sm:$0xf]
        %v313 = vld [vmem:[%s227 + $0xb8] sm:$0xf]
        %v314 = vld [vmem:[%s227 + $0xbc] sm:$0xf]
        %v315 = vld [vmem:[%s227 + $0xc0] sm:$0xf]
        %v316 = vld [vmem:[%s227 + $0xc4] sm:$0xf]
        %v317 = vld [vmem:[%s227 + $0xc8] sm:$0xf]
        %v318 = vld [vmem:[%s227 + $0xcc] sm:$0xf]
        %v319 = vld [vmem:[%s227 + $0xd0] sm:$0xf]
        %v320 = vld [vmem:[%s227 + $0xd4] sm:$0xf]
        %v321 = vld [vmem:[%s227 + $0xd8] sm:$0xf]
        %v322 = vld [vmem:[%s227 + $0xdc] sm:$0xf]
        %v323 = vld [vmem:[%s227 + $0xe0] sm:$0xf]
        %v324 = vld [vmem:[%s227 + $0xe4] sm:$0xf]
        %v325 = vld [vmem:[%s227 + $0xe8] sm:$0xf]
        %v326 = vld [vmem:[%s227 + $0xec] sm:$0xf]
        %v327 = vld [vmem:[%s227 + $0xf0] sm:$0xf]
        %v328 = vld [vmem:[%s227 + $0xf4] sm:$0xf]
        %v329 = vld [vmem:[%s227 + $0xf8] sm:$0xf]
        %v330 = vld [vmem:[%s227 + $0xfc] sm:$0xf]
        %v331 = vld [vmem:[%s227 + $0x100] sm:$0xf]
        %v332 = vld [vmem:[%s227 + $0x104] sm:$0xf]
        %v333 = vld [vmem:[%s227 + $0x108] sm:$0xf]
        %v334 = vld [vmem:[%s227 + $0x10c] sm:$0xf]
        %v335 = vld [vmem:[%s227 + $0x110] sm:$0xf]
        %v336 = vld [vmem:[%s227 + $0x114] sm:$0xf]
        %v337 = vld [vmem:[%s227 + $0x118] sm:$0xf]
        %v338 = vld [vmem:[%s227 + $0x11c] sm:$0xf]
        %v339 = vld [vmem:[%s227 + $0x120] sm:$0xf]
        %v340 = vld [vmem:[%s227 + $0x124] sm:$0xf]
        %v341 = vld [vmem:[%s227 + $0x128] sm:$0xf]
        %v342 = vld [vmem:[%s227 + $0x12c] sm:$0xf]
        %v343 = vld [vmem:[%s227 + $0x130] sm:$0xf]
        %v344 = vld [vmem:[%s227 + $0x134] sm:$0xf]
        %v345 = vld [vmem:[%s227 + $0x138] sm:$0xf]
        %v346 = vld [vmem:[%s227 + $0x13c] sm:$0xf]
        %v347 = vld [vmem:[%s227 + $0x140] sm:$0xf]
        %v348 = vld [vmem:[%s227 + $0x144] sm:$0xf]
        %v349 = vld [vmem:[%s227 + $0x148] sm:$0xf]
        %v350 = vld [vmem:[%s227 + $0x14c] sm:$0xf]
        %v351 = vld [vmem:[%s227 + $0x150] sm:$0xf]
        %v352 = vld [vmem:[%s227 + $0x154] sm:$0xf]
        %v353 = vld [vmem:[%s227 + $0x158] sm:$0xf]
        %v354 = vld [vmem:[%s227 + $0x15c] sm:$0xf]
        %v355 = vld [vmem:[%s227 + $0x160] sm:$0xf]
        %v356 = vld [vmem:[%s227 + $0x164] sm:$0xf]
        %v357 = vld [vmem:[%s227 + $0x168] sm:$0xf]
        %v358 = vld [vmem:[%s227 + $0x16c] sm:$0xf]
        %v359 = vld [vmem:[%s227 + $0x170] sm:$0xf]
        %v360 = vld [vmem:[%s227 + $0x174] sm:$0xf]
        %v361 = vld [vmem:[%s227 + $0x178] sm:$0xf]
        %v362 = vld [vmem:[%s227 + $0x17c] sm:$0xf]
        %v363 = vld [vmem:[%s227 + $0x180] sm:$0xf]
        %v364 = vld [vmem:[%s227 + $0x184] sm:$0xf]
        %v365 = vld [vmem:[%s227 + $0x188] sm:$0xf]
        %v366 = vld [vmem:[%s227 + $0x18c] sm:$0xf]
        %v367 = vld [vmem:[%s227 + $0x190] sm:$0xf]
        %v368 = vld [vmem:[%s227 + $0x194] sm:$0xf]
        %v369 = vld [vmem:[%s227 + $0x198] sm:$0xf]
        %v370 = vld [vmem:[%s227 + $0x19c] sm:$0xf]
        %v371 = vld [vmem:[%s227 + $0x1a0] sm:$0xf]
        %v372 = vld [vmem:[%s227 + $0x1a4] sm:$0xf]
        %v373 = vld [vmem:[%s227 + $0x1a8] sm:$0xf]
        %v374 = vld [vmem:[%s227 + $0x1ac] sm:$0xf]
        %v375 = vld [vmem:[%s227 + $0x1b0] sm:$0xf]
        %v376 = vld [vmem:[%s227 + $0x1b4] sm:$0xf]
        %v377 = vld [vmem:[%s227 + $0x1b8] sm:$0xf]
        %v378 = vld [vmem:[%s227 + $0x1bc] sm:$0xf]
        %v379 = vld [vmem:[%s227 + $0x1c0] sm:$0xf]
        %v380 = vld [vmem:[%s227 + $0x1c4] sm:$0xf]
        %v381 = vld [vmem:[%s227 + $0x1c8] sm:$0xf]
        %v382 = vld [vmem:[%s227 + $0x1cc] sm:$0xf]
        %v383 = vld [vmem:[%s227 + $0x1d0] sm:$0xf]
        %v384 = vld [vmem:[%s227 + $0x1d4] sm:$0xf]
        %v385 = vld [vmem:[%s227 + $0x1d8] sm:$0xf]
        %v386 = vld [vmem:[%s227 + $0x1dc] sm:$0xf]
        %v387 = vld [vmem:[%s227 + $0x1e0] sm:$0xf]
        %v388 = vld [vmem:[%s227 + $0x1e4] sm:$0xf]
        %v389 = vld [vmem:[%s227 + $0x1e8] sm:$0xf]
        %v390 = vld [vmem:[%s227 + $0x1ec] sm:$0xf]
        %v391 = vld [vmem:[%s227 + $0x1f0] sm:$0xf]
        %v392 = vld [vmem:[%s227 + $0x1f4] sm:$0xf]
        %v393 = vld [vmem:[%s227 + $0x1f8] sm:$0xf]
        %v394 = vld [vmem:[%s227 + $0x1fc] sm:$0xf]
        %v399 = vunpack.c.l.b16 %v263
        %v400 = vunpack.c.h.b16 %v263
        %v401 = vunpack.c.l.b16 %v264
        %v402 = vunpack.c.h.b16 %v264
        %v403 = vunpack.c.l.b16 %v265
        %v404 = vunpack.c.h.b16 %v265
        %v405 = vunpack.c.l.b16 %v266
        %v406 = vunpack.c.h.b16 %v266
        %v407 = vpack.c.b16 %v399, %v399
        %v408 = vpack.c.b16 %v400, %v400
        %v409 = vpack.c.b16 %v401, %v401
        %v410 = vpack.c.b16 %v402, %v402
        %v411 = vpack.c.b16 %v403, %v403
        %v412 = vpack.c.b16 %v404, %v404
        %v413 = vpack.c.b16 %v405, %v405
        %v414 = vpack.c.b16 %v406, %v406
        %v551 = vunpack.c.l.b16 %v267
        %v552 = vunpack.c.l.b16 %v268
        %v553 = vunpack.c.l.b16 %v269
        %v554 = vunpack.c.l.b16 %v270
        %v555 = vunpack.c.l.b16 %v271
        %v556 = vunpack.c.l.b16 %v272
        %v557 = vunpack.c.l.b16 %v273
        %v558 = vunpack.c.l.b16 %v274
        %v559 = vunpack.c.l.b16 %v275
        %v560 = vunpack.c.l.b16 %v276
        %v561 = vunpack.c.l.b16 %v277
        %v562 = vunpack.c.l.b16 %v278
        %v563 = vunpack.c.l.b16 %v279
        %v564 = vunpack.c.l.b16 %v280
        %v565 = vunpack.c.l.b16 %v281
        %v566 = vunpack.c.l.b16 %v282
        %v567 = vunpack.c.l.b16 %v283
        %v568 = vunpack.c.l.b16 %v284
        %v569 = vunpack.c.l.b16 %v285
        %v570 = vunpack.c.l.b16 %v286
        %v571 = vunpack.c.l.b16 %v287
        %v572 = vunpack.c.l.b16 %v288
        %v573 = vunpack.c.l.b16 %v289
        %v574 = vunpack.c.l.b16 %v290
        %v575 = vunpack.c.l.b16 %v291
        %v576 = vunpack.c.l.b16 %v292
        %v577 = vunpack.c.l.b16 %v293
        %v578 = vunpack.c.l.b16 %v294
        %v579 = vunpack.c.l.b16 %v295
        %v580 = vunpack.c.l.b16 %v296
        %v581 = vunpack.c.l.b16 %v297
        %v582 = vunpack.c.l.b16 %v298
        %v583 = vunpack.c.l.b16 %v299
        %v584 = vunpack.c.l.b16 %v300
        %v585 = vunpack.c.l.b16 %v301
        %v586 = vunpack.c.l.b16 %v302
        %v587 = vunpack.c.l.b16 %v303
        %v588 = vunpack.c.l.b16 %v304
        %v589 = vunpack.c.l.b16 %v305
        %v590 = vunpack.c.l.b16 %v306
        %v591 = vunpack.c.l.b16 %v307
        %v592 = vunpack.c.l.b16 %v308
        %v593 = vunpack.c.l.b16 %v309
        %v594 = vunpack.c.l.b16 %v310
        %v595 = vunpack.c.l.b16 %v311
        %v596 = vunpack.c.l.b16 %v312
        %v597 = vunpack.c.l.b16 %v313
        %v598 = vunpack.c.l.b16 %v314
        %v599 = vunpack.c.l.b16 %v315
        %v600 = vunpack.c.l.b16 %v316
        %v601 = vunpack.c.l.b16 %v317
        %v602 = vunpack.c.l.b16 %v318
        %v603 = vunpack.c.l.b16 %v319
        %v604 = vunpack.c.l.b16 %v320
        %v605 = vunpack.c.l.b16 %v321
        %v606 = vunpack.c.l.b16 %v322
        %v607 = vunpack.c.l.b16 %v323
        %v608 = vunpack.c.l.b16 %v324
        %v609 = vunpack.c.l.b16 %v325
        %v610 = vunpack.c.l.b16 %v326
        %v611 = vunpack.c.l.b16 %v327
        %v612 = vunpack.c.l.b16 %v328
        %v613 = vunpack.c.l.b16 %v329
        %v614 = vunpack.c.l.b16 %v330
        %v615 = vunpack.c.l.b16 %v331
        %v616 = vunpack.c.l.b16 %v332
        %v617 = vunpack.c.l.b16 %v333
        %v618 = vunpack.c.l.b16 %v334
        %v619 = vunpack.c.l.b16 %v335
        %v620 = vunpack.c.l.b16 %v336
        %v621 = vunpack.c.l.b16 %v337
        %v622 = vunpack.c.l.b16 %v338
        %v623 = vunpack.c.l.b16 %v339
        %v624 = vunpack.c.l.b16 %v340
        %v625 = vunpack.c.l.b16 %v341
        %v626 = vunpack.c.l.b16 %v342
        %v627 = vunpack.c.l.b16 %v343
        %v628 = vunpack.c.l.b16 %v344
        %v629 = vunpack.c.l.b16 %v345
        %v630 = vunpack.c.l.b16 %v346
        %v631 = vunpack.c.l.b16 %v347
        %v632 = vunpack.c.l.b16 %v348
        %v633 = vunpack.c.l.b16 %v349
        %v634 = vunpack.c.l.b16 %v350
        %v635 = vunpack.c.l.b16 %v351
        %v636 = vunpack.c.l.b16 %v352
        %v637 = vunpack.c.l.b16 %v353
        %v638 = vunpack.c.l.b16 %v354
        %v639 = vunpack.c.l.b16 %v355
        %v640 = vunpack.c.l.b16 %v356
        %v641 = vunpack.c.l.b16 %v357
        %v642 = vunpack.c.l.b16 %v358
        %v643 = vunpack.c.l.b16 %v359
        %v644 = vunpack.c.l.b16 %v360
        %v645 = vunpack.c.l.b16 %v361
        %v646 = vunpack.c.l.b16 %v362
        %v647 = vunpack.c.l.b16 %v363
        %v648 = vunpack.c.l.b16 %v364
        %v649 = vunpack.c.l.b16 %v365
        %v650 = vunpack.c.l.b16 %v366
        %v651 = vunpack.c.l.b16 %v367
        %v652 = vunpack.c.l.b16 %v368
        %v653 = vunpack.c.l.b16 %v369
        %v654 = vunpack.c.l.b16 %v370
        %v655 = vunpack.c.l.b16 %v371
        %v656 = vunpack.c.l.b16 %v372
        %v657 = vunpack.c.l.b16 %v373
        %v658 = vunpack.c.l.b16 %v374
        %v659 = vunpack.c.l.b16 %v375
        %v660 = vunpack.c.l.b16 %v376
        %v661 = vunpack.c.l.b16 %v377
        %v662 = vunpack.c.l.b16 %v378
        %v663 = vunpack.c.l.b16 %v379
        %v664 = vunpack.c.l.b16 %v380
        %v665 = vunpack.c.l.b16 %v381
        %v666 = vunpack.c.l.b16 %v382
        %v667 = vunpack.c.l.b16 %v383
        %v668 = vunpack.c.l.b16 %v384
        %v669 = vunpack.c.l.b16 %v385
        %v670 = vunpack.c.l.b16 %v386
        %v671 = vunpack.c.l.b16 %v387
        %v672 = vunpack.c.l.b16 %v388
        %v673 = vunpack.c.l.b16 %v389
        %v674 = vunpack.c.l.b16 %v390
        %v675 = vunpack.c.l.b16 %v391
        %v676 = vunpack.c.l.b16 %v392
        %v677 = vunpack.c.l.b16 %v393
        %v678 = vunpack.c.l.b16 %v394
        %v679 = vpack.c.b16 %v552, %v551
        %v680 = vpack.c.b16 %v554, %v553
        %v681 = vpack.c.b16 %v556, %v555
        %v682 = vpack.c.b16 %v558, %v557
        %v683 = vpack.c.b16 %v560, %v559
        %v684 = vpack.c.b16 %v562, %v561
        %v685 = vpack.c.b16 %v564, %v563
        %v686 = vpack.c.b16 %v566, %v565
        %v687 = vpack.c.b16 %v568, %v567
        %v688 = vpack.c.b16 %v570, %v569
        %v689 = vpack.c.b16 %v572, %v571
        %v690 = vpack.c.b16 %v574, %v573
        %v691 = vpack.c.b16 %v576, %v575
        %v692 = vpack.c.b16 %v578, %v577
        %v693 = vpack.c.b16 %v580, %v579
        %v694 = vpack.c.b16 %v582, %v581
        %v695 = vpack.c.b16 %v584, %v583
        %v696 = vpack.c.b16 %v586, %v585
        %v697 = vpack.c.b16 %v588, %v587
        %v698 = vpack.c.b16 %v590, %v589
        %v699 = vpack.c.b16 %v592, %v591
        %v700 = vpack.c.b16 %v594, %v593
        %v701 = vpack.c.b16 %v596, %v595
        %v702 = vpack.c.b16 %v598, %v597
        %v703 = vpack.c.b16 %v600, %v599
        %v704 = vpack.c.b16 %v602, %v601
        %v705 = vpack.c.b16 %v604, %v603
        %v706 = vpack.c.b16 %v606, %v605
        %v707 = vpack.c.b16 %v608, %v607
        %v708 = vpack.c.b16 %v610, %v609
        %v709 = vpack.c.b16 %v612, %v611
        %v710 = vpack.c.b16 %v614, %v613
        %v711 = vpack.c.b16 %v616, %v615
        %v712 = vpack.c.b16 %v618, %v617
        %v713 = vpack.c.b16 %v620, %v619
        %v714 = vpack.c.b16 %v622, %v621
        %v715 = vpack.c.b16 %v624, %v623
        %v716 = vpack.c.b16 %v626, %v625
        %v717 = vpack.c.b16 %v628, %v627
        %v718 = vpack.c.b16 %v630, %v629
        %v719 = vpack.c.b16 %v632, %v631
        %v720 = vpack.c.b16 %v634, %v633
        %v721 = vpack.c.b16 %v636, %v635
        %v722 = vpack.c.b16 %v638, %v637
        %v723 = vpack.c.b16 %v640, %v639
        %v724 = vpack.c.b16 %v642, %v641
        %v725 = vpack.c.b16 %v644, %v643
        %v726 = vpack.c.b16 %v646, %v645
        %v727 = vpack.c.b16 %v648, %v647
        %v728 = vpack.c.b16 %v650, %v649
        %v729 = vpack.c.b16 %v652, %v651
        %v730 = vpack.c.b16 %v654, %v653
        %v731 = vpack.c.b16 %v656, %v655
        %v732 = vpack.c.b16 %v658, %v657
        %v733 = vpack.c.b16 %v660, %v659
        %v734 = vpack.c.b16 %v662, %v661
        %v735 = vpack.c.b16 %v664, %v663
        %v736 = vpack.c.b16 %v666, %v665
        %v737 = vpack.c.b16 %v668, %v667
        %v738 = vpack.c.b16 %v670, %v669
        %v739 = vpack.c.b16 %v672, %v671
        %v740 = vpack.c.b16 %v674, %v673
        %v741 = vpack.c.b16 %v676, %v675
        %v742 = vpack.c.b16 %v678, %v677
        %807 = vmatprep.subr.bf16.mxu0 0
        %808 = vmatpush1.bf16.msra.mxu0 %v679
        %809 = vmatprep.subr.bf16.mxu0 0
        %810 = vmatpush1.bf16.msra.mxu0 %v680
        %811 = vmatprep.subr.bf16.mxu0 0
        %812 = vmatpush1.bf16.msra.mxu0 %v681
        %813 = vmatprep.subr.bf16.mxu0 0
        %814 = vmatpush1.bf16.msra.mxu0 %v682
        %815 = vmatprep.subr.bf16.mxu0 0
        %816 = vmatpush1.bf16.msra.mxu0 %v683
        %817 = vmatprep.subr.bf16.mxu0 0
        %818 = vmatpush1.bf16.msra.mxu0 %v684
        %819 = vmatprep.subr.bf16.mxu0 0
        %820 = vmatpush1.bf16.msra.mxu0 %v685
        %821 = vmatprep.subr.bf16.mxu0 0
        %822 = vmatpush1.bf16.msra.mxu0 %v686
        %823 = vmatprep.subr.bf16.mxu0 0
        %824 = vmatpush1.bf16.msra.mxu0 %v687
        %825 = vmatprep.subr.bf16.mxu0 0
        %826 = vmatpush1.bf16.msra.mxu0 %v688
        %827 = vmatprep.subr.bf16.mxu0 0
        %828 = vmatpush1.bf16.msra.mxu0 %v689
        %829 = vmatprep.subr.bf16.mxu0 0
        %830 = vmatpush1.bf16.msra.mxu0 %v690
        %831 = vmatprep.subr.bf16.mxu0 0
        %832 = vmatpush1.bf16.msra.mxu0 %v691
        %833 = vmatprep.subr.bf16.mxu0 0
        %834 = vmatpush1.bf16.msra.mxu0 %v692
        %835 = vmatprep.subr.bf16.mxu0 0
        %836 = vmatpush1.bf16.msra.mxu0 %v693
        %837 = vmatprep.subr.bf16.mxu0 0
        %838 = vmatpush1.bf16.msra.mxu0 %v694
        %839 = vmatprep.mubr.bf16.mxu0 %v408
        %840 = vmatmul.mubr.bf16.gmra.mrb[0].mxu0 %v407
        %v841 = vpop.f32.mrb[0].mxu0
        %v842 = vadd.f32 0.0, %v841
        %v843 = vpop.f32.mrb[0].mxu0
        %v844 = vpop.f32.mrb[0].mxu0
        %v845 = vpop.f32.mrb[0].mxu0
        %846 = vdwg.mxu0
        %847 = vmatprep.subr.bf16.mxu0 0
        %848 = vmatpush1.bf16.msra.mxu0 %v695
        %849 = vmatprep.subr.bf16.mxu0 0
        %850 = vmatpush1.bf16.msra.mxu0 %v696
        %851 = vmatprep.subr.bf16.mxu0 0
        %852 = vmatpush1.bf16.msra.mxu0 %v697
        %853 = vmatprep.subr.bf16.mxu0 0
        %854 = vmatpush1.bf16.msra.mxu0 %v698
        %855 = vmatprep.subr.bf16.mxu0 0
        %856 = vmatpush1.bf16.msra.mxu0 %v699
        %857 = vmatprep.subr.bf16.mxu0 0
        %858 = vmatpush1.bf16.msra.mxu0 %v700
        %859 = vmatprep.subr.bf16.mxu0 0
        %860 = vmatpush1.bf16.msra.mxu0 %v701
        %861 = vmatprep.subr.bf16.mxu0 0
        %862 = vmatpush1.bf16.msra.mxu0 %v702
        %863 = vmatprep.subr.bf16.mxu0 0
        %864 = vmatpush1.bf16.msra.mxu0 %v703
        %865 = vmatprep.subr.bf16.mxu0 0
        %866 = vmatpush1.bf16.msra.mxu0 %v704
        %867 = vmatprep.subr.bf16.mxu0 0
        %868 = vmatpush1.bf16.msra.mxu0 %v705
        %869 = vmatprep.subr.bf16.mxu0 0
        %870 = vmatpush1.bf16.msra.mxu0 %v706
        %871 = vmatprep.subr.bf16.mxu0 0
        %872 = vmatpush1.bf16.msra.mxu0 %v707
        %873 = vmatprep.subr.bf16.mxu0 0
        %874 = vmatpush1.bf16.msra.mxu0 %v708
        %875 = vmatprep.subr.bf16.mxu0 0
        %876 = vmatpush1.bf16.msra.mxu0 %v709
        %877 = vmatprep.subr.bf16.mxu0 0
        %878 = vmatpush1.bf16.msra.mxu0 %v710
        %879 = vmatprep.mubr.bf16.mxu0 %v410
        %880 = vmatmul.mubr.bf16.gmra.mrb[0].mxu0 %v409
        %v881 = vpop.f32.mrb[0].mxu0
        %v882 = vadd.f32 %v842, %v881
        %v883 = vpop.f32.mrb[0].mxu0
        %v884 = vpop.f32.mrb[0].mxu0
        %v885 = vpop.f32.mrb[0].mxu0
        %886 = vdwg.mxu0
        %887 = vmatprep.subr.bf16.mxu0 0
        %888 = vmatpush1.bf16.msra.mxu0 %v711
        %889 = vmatprep.subr.bf16.mxu0 0
        %890 = vmatpush1.bf16.msra.mxu0 %v712
        %891 = vmatprep.subr.bf16.mxu0 0
        %892 = vmatpush1.bf16.msra.mxu0 %v713
        %893 = vmatprep.subr.bf16.mxu0 0
        %894 = vmatpush1.bf16.msra.mxu0 %v714
        %895 = vmatprep.subr.bf16.mxu0 0
        %896 = vmatpush1.bf16.msra.mxu0 %v715
        %897 = vmatprep.subr.bf16.mxu0 0
        %898 = vmatpush1.bf16.msra.mxu0 %v716
        %899 = vmatprep.subr.bf16.mxu0 0
        %900 = vmatpush1.bf16.msra.mxu0 %v717
        %901 = vmatprep.subr.bf16.mxu0 0
        %902 = vmatpush1.bf16.msra.mxu0 %v718
        %903 = vmatprep.subr.bf16.mxu0 0
        %904 = vmatpush1.bf16.msra.mxu0 %v719
        %905 = vmatprep.subr.bf16.mxu0 0
        %906 = vmatpush1.bf16.msra.mxu0 %v720
        %907 = vmatprep.subr.bf16.mxu0 0
        %908 = vmatpush1.bf16.msra.mxu0 %v721
        %909 = vmatprep.subr.bf16.mxu0 0
        %910 = vmatpush1.bf16.msra.mxu0 %v722
        %911 = vmatprep.subr.bf16.mxu0 0
        %912 = vmatpush1.bf16.msra.mxu0 %v723
        %913 = vmatprep.subr.bf16.mxu0 0
        %914 = vmatpush1.bf16.msra.mxu0 %v724
        %915 = vmatprep.subr.bf16.mxu0 0
        %916 = vmatpush1.bf16.msra.mxu0 %v725
        %917 = vmatprep.subr.bf16.mxu0 0
        %918 = vmatpush1.bf16.msra.mxu0 %v726
        %919 = vmatprep.mubr.bf16.mxu0 %v412
        %920 = vmatmul.mubr.bf16.gmra.mrb[0].mxu0 %v411
        %v921 = vpop.f32.mrb[0].mxu0
        %v922 = vadd.f32 %v882, %v921
        %v923 = vpop.f32.mrb[0].mxu0
        %v924 = vpop.f32.mrb[0].mxu0
        %v925 = vpop.f32.mrb[0].mxu0
        %926 = vdwg.mxu0
        %927 = vmatprep.subr.bf16.mxu0 0
        %928 = vmatpush1.bf16.msra.mxu0 %v727
        %929 = vmatprep.subr.bf16.mxu0 0
        %930 = vmatpush1.bf16.msra.mxu0 %v728
        %931 = vmatprep.subr.bf16.mxu0 0
        %932 = vmatpush1.bf16.msra.mxu0 %v729
        %933 = vmatprep.subr.bf16.mxu0 0
        %934 = vmatpush1.bf16.msra.mxu0 %v730
        %935 = vmatprep.subr.bf16.mxu0 0
        %936 = vmatpush1.bf16.msra.mxu0 %v731
        %937 = vmatprep.subr.bf16.mxu0 0
        %938 = vmatpush1.bf16.msra.mxu0 %v732
        %939 = vmatprep.subr.bf16.mxu0 0
        %940 = vmatpush1.bf16.msra.mxu0 %v733
        %941 = vmatprep.subr.bf16.mxu0 0
        %942 = vmatpush1.bf16.msra.mxu0 %v734
        %943 = vmatprep.subr.bf16.mxu0 0
        %944 = vmatpush1.bf16.msra.mxu0 %v735
        %945 = vmatprep.subr.bf16.mxu0 0
        %946 = vmatpush1.bf16.msra.mxu0 %v736
        %947 = vmatprep.subr.bf16.mxu0 0
        %948 = vmatpush1.bf16.msra.mxu0 %v737
        %949 = vmatprep.subr.bf16.mxu0 0
        %950 = vmatpush1.bf16.msra.mxu0 %v738
        %951 = vmatprep.subr.bf16.mxu0 0
        %952 = vmatpush1.bf16.msra.mxu0 %v739
        %953 = vmatprep.subr.bf16.mxu0 0
        %954 = vmatpush1.bf16.msra.mxu0 %v740
        %955 = vmatprep.subr.bf16.mxu0 0
        %956 = vmatpush1.bf16.msra.mxu0 %v741
        %957 = vmatprep.subr.bf16.mxu0 0
        %958 = vmatpush1.bf16.msra.mxu0 %v742
        %959 = vmatprep.mubr.bf16.mxu0 %v414
        %960 = vmatmul.mubr.bf16.gmra.mrb[0].mxu0 %v413
        %v961 = vpop.f32.mrb[0].mxu0
        %v962 = vadd.f32 %v922, %v961
        %v963 = vpop.f32.mrb[0].mxu0
        %v964 = vpop.f32.mrb[0].mxu0
        %v965 = vpop.f32.mrb[0].mxu0
        %966 = vdwg.mxu0
        %v967 = vadd.f32 %v262, %v962
        %968 = vst [vmem:[#allocation2] sm:$0xff] %v967
        %p969 = scmp.eq.s32.totalorder %s26, 6
        // Predicated region
        $region49: #{tpu_custom_call.1} parent=31 // pred_check
          %p970 = pneg %p969
        $region50: #{tpu_custom_call.1} parent=31 // pred_check_branch
          %972 = sbr.rel (%p970) target = $region52
        $region51: #{tpu_custom_call.1} parent=31 // pred_region
          %v973 = vld [vmem:[#allocation2] sm:$0xff]
          %v974 = vld [vmem:[#allocation8] sm:$0x1]
          %v976 = vlaneseq
          %v977 = vshrl.u32 %v976, 7
          %v978 = vsub.s32 0, %v977
          %v979 = vrot.slane %v974, %v978
          %v981 = vadd.f32 %v973, %v979
          %v982 = vmax.f32 %v981, 0.0
          %v984 = vcombine.high %v982, %v982
          %vm986 = vcmask 1043456
          %v987 = vsel %vm986, %v982, 0.0
          %v988 = vrot.slane %v987, 4
          %v989 = vadd.f32 %v987, %v988
          %v990 = vrot.slane %v989, 2
          %v991 = vadd.f32 %v989, %v990
          %v992 = vrot.slane %v991, 1
          %v993 = vadd.f32 %v991, %v992
          %v994 = vsel %vm986, %v984, 0.0
          %v995 = vrot.slane %v994, 4
          %v996 = vadd.f32 %v994, %v995
          %v997 = vrot.slane %v996, 2
          %v998 = vadd.f32 %v996, %v997
          %v999 = vrot.slane %v998, 1
          %v1000 = vadd.f32 %v998, %v999
          %v1001 = vrcp.pop 4.0
          %v1002 = vmul.f32 %v993, %v1001
          %v1003 = vmul.f32 %v1000, %v1001
          %vm1006 = vcmask 1041409
          %v1007 = vsel %vm1006, %v1003, %v1002
          %1009 = vst [vmem:[#allocation9] sm:$0x3] %v1007
        $region52: #{tpu_custom_call.1} parent=31 // pred_fallthru
          _
        // Predicated region
        $region53: #{tpu_custom_call.1} parent=31 // pred_check
          %p1010 = pneg %p131
        $region54: #{tpu_custom_call.1} parent=31 // pred_check_branch
          %1012 = sbr.rel (%p1010) target = $region56
        $region55: #{tpu_custom_call.1} parent=31 // pred_region
          %s1014 = ssub.s32 32, 32
          %1015 = vsyncadd [#allocation5], %s1014
          %s1016 = smul.addr %s25, 32
          %s1017 = scalar_lea.hbm %s3, %s1016
          %s1019 = sshll.u32 [#allocation9], 4
          %s1020 = int_to_ptr.vmem [resolvable:$true] %s1019
          %1022 = dma.vmem_to_hbm [thread:$0]  %s1020, 32, %s1017, [#allocation5]
        $region56: #{tpu_custom_call.1} parent=31 // pred_fallthru
          _
        // Predicated region
        $region57: #{tpu_custom_call.1} parent=31 // pred_check
          %p1023 = pneg %p131
        $region58: #{tpu_custom_call.1} parent=31 // pred_check_branch
          %1025 = sbr.rel (%p1023) target = $region60
        $region59: #{tpu_custom_call.1} parent=31 // pred_region
          %1026 = dma.done [#allocation5], 32
        $region60: #{tpu_custom_call.1} parent=31 // pred_fallthru
          _
      $region32: #{tpu_custom_call.1} parent=5 // pred_fallthru
        _
      %p1027 = scmp.le.s32.totalorder 2, %s16
      // Predicated region
      $region61: #{tpu_custom_call.1} parent=5 // pred_check
        %p1028 = pneg %p1027
      $region62: #{tpu_custom_call.1} parent=5 // pred_check_branch
        %1030 = sbr.rel (%p1028) target = $region64
      $region63: #{tpu_custom_call.1} parent=5 // pred_region
        %s1031 = ssub.s32 %s16, 2
      $region64: #{tpu_custom_call.1} parent=5 // pred_fallthru
        _
    $region6: #{tpu_custom_call.1} parent=1 // loop_footer
      %s20 = sadd.s32 1, %s16
    $region7: #{tpu_custom_call.1} parent=1 // loop_footer_branch
      %15 = sbr.rel target = $region3
    $region8: #{tpu_custom_call.1} parent=1 // loop_exit
      _
    %1032 = vsyncpa [#allocation4], 1
    %s1033 = scalar_lea.sflag [#allocation4], 1
    %1034 = vsyncpa %s1033, 1
    %1035 = vsyncpa [#allocation7], 1
    %s1036 = scalar_lea.sflag [#allocation7], 1
    %1037 = vsyncpa %s1036, 1
    %1038 = vsyncpa [#allocation5], 1
    %s1039 = scalar_lea.sflag [#allocation5], 1
    %1040 = vsyncpa %s1039, 1

</llo_original>
